<compile_context>
chip_gen: v6e
topology: v6e:2x2x1
jax: 0.10.0
libtpu: 0.0.40
codegen_flags: <defaults>
</compile_context>

<pallas_src>
import functools
import math

import jax
import jax.numpy as jnp
from jax import lax
from jax.experimental import pallas as pl
from jax.experimental.pallas import tpu as pltpu


def _round_up(x, m):
    return ((x + m - 1) // m) * m


def _vmem_limit_and_budget():
    """Generation-aware scoped-VMEM limit and a planning budget below it."""
    cap = None
    try:
        cap = getattr(pltpu.get_tpu_info(), "vmem_capacity_bytes", None)
    except Exception:
        cap = None
    if not cap:
        cap = 64 * 1024 * 1024          # assume the smallest (v7x) physical VMEM
    limit = min(int(cap) // 2, 64 * 1024 * 1024)   # 64 MiB on v5e/v6e, 32 MiB on v7x
    budget = (limit * 3) // 4                      # headroom below the scoped limit
    return limit, budget


def _siren_kernel(x_ref, w_ref, b_ref, o_ref, *, use_mxu):
    """o = sin(x @ w + b); omega_0 is already folded into w and b."""
    if use_mxu:
        z = lax.dot_general(
            x_ref[...], w_ref[...],
            dimension_numbers=(((1,), (0,)), ((), ())),    # plain (M,K) x (K,N)
            preferred_element_type=jnp.float32,
        )
        z = z + b_ref[...]                                 # (1, tn) broadcast
    else:
        # Tiny contraction dim (first SIREN layer, in_feat = 2..7): a few VPU
        # broadcast-FMAs beat MXU feed/drain on a lane-sparse operand.
        x = x_ref[...].astype(jnp.float32)
        w = w_ref[...].astype(jnp.float32)
        z = b_ref[...].astype(jnp.float32)
        for k in range(x.shape[1]):                        # static, tiny
            z = z + x[:, k:k + 1] * w[k:k + 1, :]
    o_ref[...] = jnp.sin(z).astype(o_ref.dtype)


def prepare_siren_params(weight, bias, omega_0):
    """One-time parameter prep (hoist out of the hot path for repeated calls).

    Folds omega_0 into W and b, transposes W to (in_feat, out_pad) so the kernel
    contracts (M,K)x(K,N) with a lane-dense RHS, and pads out_feat to a multiple
    of 128 (padded columns are zero -> sin(0) = 0 in the padded output).
    """
    out_feat, in_feat = weight.shape
    out_pad = _round_up(out_feat, 128)
    w_t = (jnp.float32(omega_0) * weight.astype(jnp.float32)).T       # (K, N)
    b = (jnp.float32(omega_0) * bias.astype(jnp.float32)).reshape(1, out_feat)
    if out_pad != out_feat:
        w_t = jnp.pad(w_t, ((0, 0), (0, out_pad - out_feat)))
        b = jnp.pad(b, ((0, 0), (0, out_pad - out_feat)))
    return w_t, b


def siren_linear_padded(x, w_t, b):
    """Hot path: sin(x @ w_t + b) -> (n, out_pad). No pad/slice of x or y."""
    n, in_feat = x.shape
    k_w, out_pad = w_t.shape
    assert k_w == in_feat and out_pad % 128 == 0 and b.shape == (1, out_pad)

    itemsize = 4
    vmem_limit, budget = _vmem_limit_and_budget()

    # Weight tile along out_pad: keep W fully resident when it fits, otherwise
    # tile the N axis (keeps the batch tile large on v7x's smaller VMEM).
    w_all_bytes = 2 * in_feat * out_pad * itemsize          # double-buffered block
    if w_all_bytes <= budget // 2:
        tn = out_pad
    else:
        tn = (budget // 2) // (2 * in_feat * itemsize) // 128 * 128
        tn = max(128, min(tn, out_pad))
    grid_n = pl.cdiv(out_pad, tn)

    # Batch tile: large enough to amortize per-step overhead, small enough to
    # give >= 4 grid steps when the batch allows (>= 2 per v7x TensorCore).
    fixed = 2 * (in_feat * tn + tn) * itemsize              # W + bias buffers
    per_row = 2 * (in_feat + tn) * itemsize                 # x + out, double-buffered
    avail = max(budget - fixed, 8 * per_row)
    tm_cap = max(8, (avail // per_row) // 8 * 8)
    desired = _round_up(max(pl.cdiv(n, 4), 1), 8)
    tm = max(8, min(1024, tm_cap, desired, _round_up(n, 8)))
    grid_m = pl.cdiv(n, tm)

    kernel = functools.partial(_siren_kernel, use_mxu=(in_feat >= 8))

    return pl.pallas_call(
        kernel,
        out_shape=jax.ShapeDtypeStruct((n, out_pad), x.dtype),
        grid=(grid_n, grid_m),                 # N tiles outer, batch tiles inner
        in_specs=[
            pl.BlockSpec((tm, in_feat), lambda j, i: (i, 0)),   # x rows
            pl.BlockSpec((in_feat, tn), lambda j, i: (0, j)),   # pre-transposed W
            pl.BlockSpec((1, tn), lambda j, i: (0, j)),         # pre-scaled bias
        ],
        out_specs=pl.BlockSpec((tm, tn), lambda j, i: (i, j)),
        compiler_params=pltpu.CompilerParams(
            dimension_semantics=("parallel", "parallel"),
            vmem_limit_bytes=vmem_limit,
        ),
    )(x, w_t, b)


def siren_linear(x, weight, bias, omega_0):
    """y = sin(omega_0 * (x @ weight.T + bias)), matching the PyTorch module.

    For multi-layer SIREN stacks, call prepare_siren_params once per layer and
    keep activations at the 128-padded width to avoid the final slice per layer.
    """
    out_feat = weight.shape[0]
    w_t, b = prepare_siren_params(weight, bias, omega_0)
    y = siren_linear_padded(x, w_t, b)
    return y if y.shape[1] == out_feat else y[:, :out_feat]


def init_siren_params(key, in_feat, out_feat, is_first=False, omega_0=50.0):
    """Deterministic SIREN init matching the PyTorch module."""
    wkey, bkey = jax.random.split(key)
    if is_first:
        bound = 1.0 / in_feat
    else:
        bound = math.sqrt(6.0 / in_feat) / omega_0
    weight = jax.random.uniform(
        wkey, (out_feat, in_feat), dtype=jnp.float32, minval=-bound, maxval=bound)
    bbound = 1.0 / math.sqrt(in_feat)                # nn.Linear default bias init
    bias = jax.random.uniform(
        bkey, (out_feat,), dtype=jnp.float32, minval=-bbound, maxval=bbound)
    return weight, bias


def _reference(x, weight, bias, omega_0):
    z = jnp.dot(x, weight.T, precision=lax.Precision.HIGHEST) + bias
    return jnp.sin(omega_0 * z)


if __name__ == "__main__":
    key = jax.random.PRNGKey(0)
    k1, k2, k3, k4 = jax.random.split(key, 4)
    omega_0 = 50.0

    # Hidden SIREN layer (MXU path): batch=64, in_feat=32, out_feat=32.
    n, in_feat, out_feat = 64, 32, 32
    x = jax.random.normal(k1, (n, in_feat), dtype=jnp.float32)
    w, b = init_siren_params(k2, in_feat, out_feat, is_first=False, omega_0=omega_0)
    y = jax.block_until_ready(siren_linear(x, w, b, omega_0))
    ref = _reference(x, w, b, omega_0)
    assert y.shape == (n, out_feat)
    assert jnp.allclose(y, ref, atol=3e-3), float(jnp.max(jnp.abs(y - ref)))

    # First SIREN layer (tiny K -> VPU FMA path): batch=64, in_feat=2, out_feat=32.
    n2, in2, out2 = 64, 2, 32
    x2 = jax.random.uniform(k3, (n2, in2), dtype=jnp.float32, minval=-1.0, maxval=1.0)
    w2, b2 = init_siren_params(k4, in2, out2, is_first=True, omega_0=omega_0)
    y2 = jax.block_until_ready(siren_linear(x2, w2, b2, omega_0))
    ref2 = _reference(x2, w2, b2, omega_0)
    assert y2.shape == (n2, out2)
    assert jnp.allclose(y2, ref2, atol=3e-3), float(jnp.max(jnp.abs(y2 - ref2)))

    print("KERNEL_OK")
</pallas_src>

<mosaic_0001>
module attributes {stable_mosaic.version = 11 : i64} {
  func.func @_siren_kernel(%arg0: i32, %arg1: i32, %arg2: memref<16x32xf32, #tpu.memory_space<vmem>>, %arg3: memref<32x128xf32, #tpu.memory_space<vmem>>, %arg4: memref<1x128xf32, #tpu.memory_space<vmem>>, %arg5: memref<16x128xf32, #tpu.memory_space<vmem>>) attributes {dimension_semantics = [#tpu.dimension_semantics<parallel>, #tpu.dimension_semantics<parallel>], iteration_bounds = array<i64: 1, 4>, scalar_prefetch = 0 : i64, scratch_operands = 0 : i64, tpu.core_type = #tpu.core_type<tc>, window_params = [{transform_indices = @transform_0, window_bounds = array<i64: 16, 32>}, {transform_indices = @transform_1, window_bounds = array<i64: 32, 128>}, {transform_indices = @transform_2, window_bounds = array<i64: 1, 128>}, {transform_indices = @transform_3, window_bounds = array<i64: 16, 128>}]} {
    %c0 = arith.constant 0 : index
    %c0_0 = arith.constant 0 : index
    %0 = vector.load %arg2[%c0, %c0_0] : memref<16x32xf32, #tpu.memory_space<vmem>>, vector<16x32xf32>
    %c0_1 = arith.constant 0 : index
    %c0_2 = arith.constant 0 : index
    %1 = vector.load %arg3[%c0_1, %c0_2] : memref<32x128xf32, #tpu.memory_space<vmem>>, vector<32x128xf32>
    %cst = arith.constant dense<0.000000e+00> : vector<16x128xf32>
    %2 = tpu.matmul %0, %1, %cst {dimension_numbers = #tpu.dot_dimension_numbers<[1], [0], [0], [1], [0, 0, 1, 1], [], []>} : vector<16x32xf32>, vector<32x128xf32>, vector<16x128xf32> -> vector<16x128xf32>
    %c0_3 = arith.constant 0 : index
    %c0_4 = arith.constant 0 : index
    %3 = vector.load %arg4[%c0_3, %c0_4] : memref<1x128xf32, #tpu.memory_space<vmem>>, vector<1x128xf32>
    %4 = vector.broadcast %3 : vector<1x128xf32> to vector<16x128xf32>
    %5 = arith.addf %2, %4 : vector<16x128xf32>
    %6 = math.sin %5 : vector<16x128xf32>
    %c0_5 = arith.constant 0 : index
    %c0_6 = arith.constant 0 : index
    %7 = vector.load %arg5[%c0_5, %c0_6] : memref<16x128xf32, #tpu.memory_space<vmem>>, vector<16x128xf32>
    tpu.vector_store %arg5[%c0_5, %c0_6], %6 {strides = array<i32>} : memref<16x128xf32, #tpu.memory_space<vmem>>, vector<16x128xf32>,
    return
  }
  func.func @transform_0(%arg0: i32, %arg1: i32) -> (i32, i32) {
    %c0_i32 = arith.constant 0 : i32
    %c0_i32_0 = arith.constant 0 : i32
    return %arg1, %c0_i32 : i32, i32
  }
  func.func @transform_1(%arg0: i32, %arg1: i32) -> (i32, i32) {
    %c0_i32 = arith.constant 0 : i32
    %c0_i32_0 = arith.constant 0 : i32
    return %c0_i32, %arg0 : i32, i32
  }
  func.func @transform_2(%arg0: i32, %arg1: i32) -> (i32, i32) {
    %c0_i32 = arith.constant 0 : i32
    %c0_i32_0 = arith.constant 0 : i32
    return %c0_i32, %arg0 : i32, i32
  }
  func.func @transform_3(%arg0: i32, %arg1: i32) -> (i32, i32) {
    %c0_i32 = arith.constant 0 : i32
    return %arg1, %arg0 : i32, i32
  }
}

</mosaic_0001>

<llo_original>
// kernel: tpu_custom_call.1
$region0: #{tpu_custom_call.1}
  #allocation0 [shape = 'u32[]', space=smem, size = 0x4, offset = 0x4, fixed_abs, tag = 'smem constant byte address 0x4 - core index']
  #allocation1 [shape = 'u32[144,128]{1,0:T(1,128)}', space=vmem, size = 0x12000, scoped, tag = 'internal scratch']
  %s0 = inlined_call_operand.vmem [shape: f32[64,32], index: 0, kind: input, shape index: {}]
  %s1 = inlined_call_operand.vmem [shape: f32[32,128], index: 1, kind: input, shape index: {}]
  %s2 = inlined_call_operand.vmem [shape: f32[1,128], index: 2, kind: input, shape index: {}]
  %s3 = inlined_call_operand.hbm [shape: f32[64,128], index: 3, kind: output, shape index: {}]
  %s4 = sld [smem:[#allocation0]]
  $region45: #{tpu_custom_call.1} parent=0
    _
  %s6 = ssub.s32 1, %s4
  %s7 = scalar_select 0, %s6, %s4
  $region1: #{tpu_custom_call.1} parent=0
    #allocation2 [shape = 'u8[16384]{0}', space=vmem, size = 0x4000, scoped, tag = 'output window, operand 0']
    #allocation3 [shape = 's32[2]{0}', space=sflag, size = 0x8, scoped, tag = 'scoped memory for tpu_custom_call.1']
    %8 = vsyncpa [#allocation3], 0
    %s9 = scalar_lea.sflag [#allocation3], 1
    %10 = vsyncpa %s9, 0
    loop: start=0, step=1, limit=6
    $region2: #{tpu_custom_call.1} parent=1 // loop_pre_header
      _
    $region3: #{tpu_custom_call.1} parent=1 // loop_header
      %s12 = sphi 0, %s16
      %p13 = scmp.ge.s32.totalorder %s12, 6
      %s19 = sphi 0, %s31
      %s20 = sphi 0, %s27
      %s21 = sphi 0, %s19
      %s22 = sphi 0, %s20
      %s23 = sphi 0, %s21
      %s24 = sphi 0, %s22
      %s34 = sphi 0, %s36
      %s37 = sphi 0, %s34
      %s38 = sphi 0, %s37
      %s54 = sphi 0, %s38
      %s60 = sphi 0, %s62
      %s63 = sphi 0, %s60
      %s64 = sphi 0, %s63
      %s80 = sphi 0, %s64
      %s86 = sphi 0, %s88
      %s89 = sphi 0, %s86
      %s90 = sphi 0, %s89
      %s106 = sphi 0, %s90
      %s114 = sphi 0, %s116
      %s117 = sphi 0, %s114
      %s118 = sphi 0, %s117
      %s134 = sphi 0, %s118
    $region4: #{tpu_custom_call.1} parent=1 // loop_header_branch
      %15 = sbr.rel (%p13) target = $region8
    $region5: #{tpu_custom_call.1} parent=1 // loop_body
      %s17 = ssub.s32 %s12, 1
      %s18 = ssub.s32 %s12, 2
      %s25 = sadd.s32 1, %s20
      %p26 = scmp.ge.s32.totalorder %s25, 4
      %s27 = scalar_select %p26, 0, %s25
      %s28 = sadd.s32 1, %s19
      %s29 = scalar_select %p26, %s28, %s19
      %p30 = scmp.ge.s32.totalorder %s29, 1
      %s31 = scalar_select %p30, 0, %s29
      %s32 = ssub.s32 %s20, %s27
      %p33 = scmp.eq.s32.totalorder %s32, 0
      %s35 = sadd.s32 %s34, 1
      %s36 = scalar_select %p33, %s34, %s35
      %p39 = pneg %p33
      %p40 = scmp.eq.s32.totalorder %s12, 3
      %p41 = por %p39, %p40
      %p42 = scmp.ne.s32.totalorder %s34, %s37
      %p43 = scmp.eq.s32.totalorder %s12, 0
      %p44 = por %p42, %p43
      %p45 = scmp.ne.s32.totalorder %s34, %s37
      %p46 = scmp.eq.s32.totalorder %s17, 3
      %p47 = por %p45, %p46
      %p48 = scmp.ne.s32.totalorder %s37, %s38
      %p49 = scmp.eq.s32.totalorder %s17, 0
      %p50 = por %p48, %p49
      %p51 = scmp.ne.s32.totalorder %s37, %s38
      %p52 = scmp.eq.s32.totalorder %s18, 3
      %p53 = por %p51, %p52
      %p55 = scmp.ne.s32.totalorder %s38, %s54
      %p56 = scmp.eq.s32.totalorder %s18, 0
      %p57 = por %p55, %p56
      %s58 = ssub.s32 %s19, %s31
      %p59 = scmp.eq.s32.totalorder %s58, 0
      %s61 = sadd.s32 %s60, 1
      %s62 = scalar_select %p59, %s60, %s61
      %p65 = pneg %p59
      %p66 = scmp.eq.s32.totalorder %s12, 3
      %p67 = por %p65, %p66
      %p68 = scmp.ne.s32.totalorder %s60, %s63
      %p69 = scmp.eq.s32.totalorder %s12, 0
      %p70 = por %p68, %p69
      %p71 = scmp.ne.s32.totalorder %s60, %s63
      %p72 = scmp.eq.s32.totalorder %s17, 3
      %p73 = por %p71, %p72
      %p74 = scmp.ne.s32.totalorder %s63, %s64
      %p75 = scmp.eq.s32.totalorder %s17, 0
      %p76 = por %p74, %p75
      %p77 = scmp.ne.s32.totalorder %s63, %s64
      %p78 = scmp.eq.s32.totalorder %s18, 3
      %p79 = por %p77, %p78
      %p81 = scmp.ne.s32.totalorder %s64, %s80
      %p82 = scmp.eq.s32.totalorder %s18, 0
      %p83 = por %p81, %p82
      %s84 = ssub.s32 %s19, %s31
      %p85 = scmp.eq.s32.totalorder %s84, 0
      %s87 = sadd.s32 %s86, 1
      %s88 = scalar_select %p85, %s86, %s87
      %p91 = pneg %p85
      %p92 = scmp.eq.s32.totalorder %s12, 3
      %p93 = por %p91, %p92
      %p94 = scmp.ne.s32.totalorder %s86, %s89
      %p95 = scmp.eq.s32.totalorder %s12, 0
      %p96 = por %p94, %p95
      %p97 = scmp.ne.s32.totalorder %s86, %s89
      %p98 = scmp.eq.s32.totalorder %s17, 3
      %p99 = por %p97, %p98
      %p100 = scmp.ne.s32.totalorder %s89, %s90
      %p101 = scmp.eq.s32.totalorder %s17, 0
      %p102 = por %p100, %p101
      %p103 = scmp.ne.s32.totalorder %s89, %s90
      %p104 = scmp.eq.s32.totalorder %s18, 3
      %p105 = por %p103, %p104
      %p107 = scmp.ne.s32.totalorder %s90, %s106
      %p108 = scmp.eq.s32.totalorder %s18, 0
      %p109 = por %p107, %p108
      %s110 = ssub.s32 %s20, %s27
      %s111 = ssub.s32 %s19, %s31
      %s112 = sor.u32 %s110, %s111
      %p113 = scmp.eq.s32.totalorder %s112, 0
      %s115 = sadd.s32 %s114, 1
      %s116 = scalar_select %p113, %s114, %s115
      %p119 = pneg %p113
      %p120 = scmp.eq.s32.totalorder %s12, 3
      %p121 = por %p119, %p120
      %p122 = scmp.ne.s32.totalorder %s114, %s117
      %p123 = scmp.eq.s32.totalorder %s12, 0
      %p124 = por %p122, %p123
      %p125 = scmp.ne.s32.totalorder %s114, %s117
      %p126 = scmp.eq.s32.totalorder %s17, 3
      %p127 = por %p125, %p126
      %p128 = scmp.ne.s32.totalorder %s117, %s118
      %p129 = scmp.eq.s32.totalorder %s17, 0
      %p130 = por %p128, %p129
      %p131 = scmp.ne.s32.totalorder %s117, %s118
      %p132 = scmp.eq.s32.totalorder %s18, 3
      %p133 = por %p131, %p132
      %p135 = scmp.ne.s32.totalorder %s118, %s134
      %p136 = scmp.eq.s32.totalorder %s18, 0
      %p137 = por %p135, %p136
      %p138 = scmp.le.s32.totalorder 1, %s12
      %p139 = scmp.lt.s32.totalorder %s12, 5
      %p140 = pnand %p138, %p139
      %p141 = pneg %p140
      // Predicated region
      $region9: #{tpu_custom_call.1} parent=5 // pred_check
        _
      $region10: #{tpu_custom_call.1} parent=5 // pred_check_branch
        %143 = sbr.rel (%p140) target = $region12
      $region11: #{tpu_custom_call.1} parent=5 // pred_region
        %s144 = ssub.s32 %s12, 1
        // Predicated region
        $region13: #{tpu_custom_call.1} parent=11 // pred_check
          %p145 = pneg %p76
        $region14: #{tpu_custom_call.1} parent=11 // pred_check_branch
          %147 = sbr.rel (%p145) target = $region16
        $region15: #{tpu_custom_call.1} parent=11 // pred_region
          %p148 = scmp.lt.s32.totalorder %s21, 0
          %s149 = scalar_select %p148, %s21, 0
          %s150 = smul.addr %s149, 8
          %s151 = scalar_lea.vmem %s1, %s150
        $region16: #{tpu_custom_call.1} parent=11 // pred_fallthru
          _
        // Predicated region
        $region17: #{tpu_custom_call.1} parent=11 // pred_check
          %p152 = pneg %p102
        $region18: #{tpu_custom_call.1} parent=11 // pred_check_branch
          %154 = sbr.rel (%p152) target = $region20
        $region19: #{tpu_custom_call.1} parent=11 // pred_region
          %p155 = scmp.lt.s32.totalorder %s21, 0
          %s156 = scalar_select %p155, %s21, 0
          %s157 = scalar_lea.vmem %s2, %s156
        $region20: #{tpu_custom_call.1} parent=11 // pred_fallthru
          _
      $region12: #{tpu_custom_call.1} parent=5 // pred_fallthru
        _
      %p158 = scmp.lt.s32.totalorder %s12, 4
      // Predicated region
      $region21: #{tpu_custom_call.1} parent=5 // pred_check
        %p159 = pneg %p158
      $region22: #{tpu_custom_call.1} parent=5 // pred_check_branch
        %161 = sbr.rel (%p159) target = $region24
      $region23: #{tpu_custom_call.1} parent=5 // pred_region
        // Predicated region
        $region25: #{tpu_custom_call.1} parent=23 // pred_check
          %p162 = pneg %p44
        $region26: #{tpu_custom_call.1} parent=23 // pred_check_branch
          %164 = sbr.rel (%p162) target = $region28
        $region27: #{tpu_custom_call.1} parent=23 // pred_region
          %s165 = smul.u32 2, %s20
          %p166 = scmp.lt.s32.totalorder %s165, 7
          %s167 = scalar_select %p166, %s165, 7
          %s168 = smul.addr %s167, 8
          %s169 = scalar_lea.vmem %s0, %s168
          %s170 = smul.u32 2, %s20
        $region28: #{tpu_custom_call.1} parent=23 // pred_fallthru
          _
      $region24: #{tpu_custom_call.1} parent=5 // pred_fallthru
        _
      %p171 = scmp.le.s32.totalorder 1, %s12
      %p172 = scmp.lt.s32.totalorder %s12, 5
      %p173 = pnand %p171, %p172
      %p174 = pneg %p173
      // Predicated region
      $region29: #{tpu_custom_call.1} parent=5 // pred_check
        _
      $region30: #{tpu_custom_call.1} parent=5 // pred_check_branch
        %176 = sbr.rel (%p173) target = $region32
      $region31: #{tpu_custom_call.1} parent=5 // pred_region
        %s177 = ssub.s32 %s12, 1
        %s178 = smul.u32 2, %s22
        %p179 = scmp.lt.s32.totalorder %s178, 7
        %s180 = scalar_select %p179, %s178, 7
        %s181 = smul.addr %s180, 8
        %s182 = scalar_lea.vmem %s0, %s181
        %p183 = pneg %p50
        %p184 = pneg %p47
        %p185 = scmp.lt.s32.totalorder %s21, 0
        %s186 = scalar_select %p185, %s21, 0
        %s187 = smul.addr %s186, 8
        %s188 = scalar_lea.vmem %s1, %s187
        %p189 = pneg %p76
        %p190 = pneg %p73
        %p191 = scmp.lt.s32.totalorder %s21, 0
        %s192 = scalar_select %p191, %s21, 0
        %s193 = scalar_lea.vmem %s2, %s192
        %p194 = pneg %p102
        %p195 = pneg %p99
        %p196 = pneg %p130
        %p197 = pneg %p127
        %s198 = sand.u32 %s117, 1
        %s199 = scalar_lea.sflag [#allocation3], %s198
        %s200 = sand.u32 %s117, 1
        %s201 = smul.addr %s200, 16
        %s202 = scalar_lea.vmem [#allocation2], %s201
        %s203 = smul.u32 2, %s22
        %p204 = scmp.lt.s32.totalorder %s203, 7
        %s205 = scalar_select %p204, %s203, 7
        %s206 = smul.addr %s205, 8
        %s207 = scalar_lea.vmem %s0, %s206
        %s208 = smul.u32 2, %s22
        %p209 = scmp.lt.s32.totalorder %s21, 0
        %s210 = scalar_select %p209, %s21, 0
        %s211 = smul.addr %s210, 8
        %s212 = scalar_lea.vmem %s1, %s211
        %p213 = scmp.lt.s32.totalorder %s21, 0
        %s214 = scalar_select %p213, %s21, 0
        %s215 = scalar_lea.vmem %s2, %s214
        %s216 = smul.u32 2, %s22
        %v217 = vld [vmem:[%s207] sm:$0xff]
        %v218 = vld [vmem:[%s207 + $0x8] sm:$0xff]
        %v219 = vld [vmem:[%s212] sm:$0xff]
        %v220 = vld [vmem:[%s212 + $0x8] sm:$0xff]
        %v221 = vld [vmem:[%s212 + $0x10] sm:$0xff]
        %v222 = vld [vmem:[%s212 + $0x18] sm:$0xff]
        %v223 = vld [vmem:[%s215] sm:$0x1]
        %v225 = vlaneseq
        %v226 = vshrl.u32 %v225, 7
        %v227 = vsub.s32 0, %v226
        %v228 = vrot.slane %v223, %v227
        %vm230 = vcmask 261120
        %v232 = vsel %vm230, %v217, 0
        %v235 = vsel %vm230, %v218, 0
        %237 = vmatprep.subr.mxu0 0.0
        %238 = vmatpush1.msra.mxu0 0.0
        %239 = vmatprep.subr.mxu0 0.0
        %240 = vmatpush1.msra.mxu0 0.0
        %241 = vmatprep.subr.mxu0 0.0
        %242 = vmatpush1.msra.mxu0 0.0
        %243 = vmatprep.subr.mxu0 0.0
        %244 = vmatpush1.msra.mxu0 0.0
        %245 = vmatprep.subr.mxu0 0.0
        %246 = vmatpush1.msra.mxu0 0.0
        %247 = vmatprep.subr.mxu0 0.0
        %248 = vmatpush1.msra.mxu0 0.0
        %249 = vmatprep.subr.mxu0 0.0
        %250 = vmatpush1.msra.mxu0 0.0
        %251 = vmatprep.subr.mxu0 0.0
        %252 = vmatpush1.msra.mxu0 0.0
        %253 = vmatprep.subr.mxu0 0.0
        %254 = vmatpush1.msra.mxu0 0.0
        %255 = vmatprep.subr.mxu0 0.0
        %256 = vmatpush1.msra.mxu0 0.0
        %257 = vmatprep.subr.mxu0 0.0
        %258 = vmatpush1.msra.mxu0 0.0
        %259 = vmatprep.subr.mxu0 0.0
        %260 = vmatpush1.msra.mxu0 0.0
        %261 = vmatprep.subr.mxu0 0.0
        %262 = vmatpush1.msra.mxu0 %v222
        %263 = vmatprep.subr.mxu0 0.0
        %264 = vmatpush1.msra.mxu0 %v221
        %265 = vmatprep.subr.mxu0 0.0
        %266 = vmatpush1.msra.mxu0 %v220
        %267 = vmatprep.subr.mxu0 0.0
        %268 = vmatpush1.msra.mxu0 %v219
        %269 = vmatprep.subr.mxu0 0.0
        %270 = vmatpush2.msra.mxu0 0.0
        %271 = vmatprep.subr.mxu0 0.0
        %272 = vmatpush2.msra.mxu0 0.0
        %273 = vmatprep.subr.mxu0 0.0
        %274 = vmatpush2.msra.mxu0 0.0
        %275 = vmatprep.subr.mxu0 0.0
        %276 = vmatpush2.msra.mxu0 0.0
        %277 = vmatprep.subr.mxu0 0.0
        %278 = vmatpush2.msra.mxu0 0.0
        %279 = vmatprep.subr.mxu0 0.0
        %280 = vmatpush2.msra.mxu0 0.0
        %281 = vmatprep.subr.mxu0 0.0
        %282 = vmatpush2.msra.mxu0 0.0
        %283 = vmatprep.subr.mxu0 0.0
        %284 = vmatpush2.msra.mxu0 0.0
        %285 = vmatprep.subr.mxu0 0.0
        %286 = vmatpush2.msra.mxu0 0.0
        %287 = vmatprep.subr.mxu0 0.0
        %288 = vmatpush2.msra.mxu0 0.0
        %289 = vmatprep.subr.mxu0 0.0
        %290 = vmatpush2.msra.mxu0 0.0
        %291 = vmatprep.subr.mxu0 0.0
        %292 = vmatpush2.msra.mxu0 0.0
        %293 = vmatprep.subr.mxu0 0.0
        %294 = vmatpush2.msra.mxu0 0.0
        %295 = vmatprep.subr.mxu0 0.0
        %296 = vmatpush2.msra.mxu0 0.0
        %297 = vmatprep.subr.mxu0 0.0
        %298 = vmatpush2.msra.mxu0 0.0
        %299 = vmatprep.subr.mxu0 0.0
        %300 = vmatpush2.msra.mxu0 0.0
        %301 = vmatprep.mubr.f32.mxu0 0.0
        %302 = vmatmul.mubr.f32.gmra.mxu0 %v232
        %v303 = vpop.f32.mrf.mxu0
        %v304 = vadd.f32 %v228, %v303
        %v305 = vpop.f32.mrf.mxu0
        %306 = vmatprep.mubr.f32.mxu0 0.0
        %307 = vmatmul.mubr.f32.gmra.mxu0 %v235
        %v308 = vpop.f32.mrf.mxu0
        %v309 = vadd.f32 %v228, %v308
        %v310 = vpop.f32.mrf.mxu0
        %311 = vdwg.mxu0
        %v312 = vand.u32 2147483647, %v304
        %vm313 = vcmp.le.f32.partialorder %v312, 0.7853982
        %vm314 = vcmp.lt.s32.totalorder %v304, 0
        %v315 = vand.u32 %v304, 2139095040
        %v316 = vshrl.u32 %v315, 23
        %v317 = vsub.s32 %v316, 127
        %v318 = vand.u32 2147483647, %v304
        %v319 = vand.u32 %v318, 8388607
        %v320 = vor.u32 %v319, 8388608
        %v321 = vsub.s32 0, %v320
        %v322 = vadd.s32 %v317, 1
        %vm323 = vcmp.gt.s32.totalorder %v322, 0
        %v324 = vsel %vm323, %v322, 0
        %v325 = vshrl.u32 %v324, 5
        %v326 = vand.u32 %v324, 31
        %v327 = vsub.s32 32, %v326
        %v328 = vshrl.u32 683565275, %v327
        %v329 = vshll.u32 683565275, %v326
        %v330 = vshrl.u32 2475754826, %v327
        %v331 = vor.u32 %v329, %v330
        %v332 = vshll.u32 2475754826, %v326
        %v333 = vshrl.u32 2131351028, %v327
        %v334 = vor.u32 %v332, %v333
        %v335 = vshll.u32 2131351028, %v326
        %v336 = vshrl.u32 2102212464, %v327
        %v337 = vor.u32 %v335, %v336
        %v338 = vshll.u32 2102212464, %v326
        %v339 = vshrl.u32 920167782, %v327
        %v340 = vor.u32 %v338, %v339
        %v341 = vshll.u32 920167782, %v326
        %v342 = vshrl.u32 1326507024, %v327
        %v343 = vor.u32 %v341, %v342
        %vm344 = vcmp.lt.s32.totalorder %v325, 1
        %vm345 = vcmp.lt.s32.totalorder %v325, 2
        %vm346 = vcmp.lt.s32.totalorder %v325, 3
        %vm347 = vcmp.lt.s32.totalorder %v325, 4
        %v348 = vsel %vm344, %v328, %v331
        %v349 = vsel %vm347, %v337, 2102212464
        %v350 = vsel %vm346, %v334, %v349
        %v351 = vsel %vm345, %v348, %v350
        %v352 = vsel %vm344, %v331, %v334
        %v353 = vsel %vm347, %v340, 920167782
        %v354 = vsel %vm346, %v337, %v353
        %v355 = vsel %vm345, %v352, %v354
        %v356 = vsel %vm344, %v334, %v337
        %v357 = vsel %vm347, %v343, 1326507024
        %v358 = vsel %vm346, %v340, %v357
        %v359 = vsel %vm345, %v356, %v358
        %v360 = vshll.u32 %v320, 8
        %v361 = vmul.u32.u64.compose %v360, %v359
        %v362 = vextract.low.u32 %v361
        %v363 = vextract.high.u32 %v361
        %v364 = vmul.u32.u64.compose %v360, %v355
        %v365 = vextract.low.u32 %v364
        %v366 = vextract.high.u32 %v364
        %v367 = vmul.u32 %v360, %v351
        %v368 = vadd.s32 %v363, %v365
        %vm369 = vc.u32 %v363, %v365
        %v370 = vadd.s32 %v366, 1
        %v371 = vsel %vm369, %v370, %v366
        %v372 = vadd.s32 %v367, %v371
        %v373 = vadd.s32 %v372, 536870912
        %v374 = vshrl.u32 %v373, 30
        %v375 = vshll.u32 %v374, 30
        %v376 = vsub.s32 %v372, %v375
        %vm377 = vcmp.lt.s32.totalorder %v376, 0
        %v378 = vsub.s32 0, %v376
        %v379 = vsel %vm377, %v378, %v376
        %v380 = vclz %v379
        %v381 = vsub.s32 %v380, 2
        %vm382 = vcmp.gt.s32.totalorder 0, %v381
        %v383 = vsel %vm382, 0, %v381
        %v384 = vsub.s32 32, %v383
        %v385 = vshll.u32 %v376, %v383
        %v386 = vshrl.u32 %v368, %v384
        %v387 = vor.u32 %v385, %v386
        %v388 = vsub.s32 4294967266, %v383
        %v389 = vadd.s32 %v388, 127
        %v390 = vshll.u32 %v389, 23
        %v391 = vor.u32 4788187, %v390
        %v392 = vand.u32 2147483647, %v391
        %v394 = vcvt.s32.f32 %v387
        %v395 = vmul.f32 %v394, %v392
        %v396 = vxor.u32 %v395, 2147483648
        %v397 = vsel %vm314, %v396, %v395
        %v398 = vsub.s32 4, %v374
        %v399 = vsel %vm314, %v398, %v374
        %v400 = vsel %vm313, %v304, %v397
        %v401 = vsel %vm313, 0, %v399
        %v402 = vcosq.f32.pop %v400
        %v403 = vsinq.f32.pop %v400
        %vm404 = vweird.f32 %v304
        %v405 = vadd.s32 %v401, 3
        %v406 = vand.u32 %v405, 3
        %vm407 = vcmp.lt.s32.totalorder %v406, 2
        %vm408 = vcmp.eq.s32.totalorder %v406, 0
        %v409 = vxor.u32 %v403, 2147483648
        %v410 = vsel %vm408, %v402, %v409
        %vm411 = vcmp.eq.s32.totalorder %v406, 2
        %v412 = vxor.u32 %v402, 2147483648
        %v413 = vsel %vm411, %v412, %v403
        %v414 = vsel %vm407, %v410, %v413
        %v415 = vsel %vm404, nan, %v414
        %v416 = vand.u32 2147483647, %v309
        %vm417 = vcmp.le.f32.partialorder %v416, 0.7853982
        %vm418 = vcmp.lt.s32.totalorder %v309, 0
        %v419 = vand.u32 %v309, 2139095040
        %v420 = vshrl.u32 %v419, 23
        %v421 = vsub.s32 %v420, 127
        %v422 = vand.u32 2147483647, %v309
        %v423 = vand.u32 %v422, 8388607
        %v424 = vor.u32 %v423, 8388608
        %v425 = vsub.s32 0, %v424
        %v426 = vadd.s32 %v421, 1
        %vm427 = vcmp.gt.s32.totalorder %v426, 0
        %v428 = vsel %vm427, %v426, 0
        %v429 = vshrl.u32 %v428, 5
        %v430 = vand.u32 %v428, 31
        %v431 = vsub.s32 32, %v430
        %v432 = vshrl.u32 683565275, %v431
        %v433 = vshll.u32 683565275, %v430
        %v434 = vshrl.u32 2475754826, %v431
        %v435 = vor.u32 %v433, %v434
        %v436 = vshll.u32 2475754826, %v430
        %v437 = vshrl.u32 2131351028, %v431
        %v438 = vor.u32 %v436, %v437
        %v439 = vshll.u32 2131351028, %v430
        %v440 = vshrl.u32 2102212464, %v431
        %v441 = vor.u32 %v439, %v440
        %v442 = vshll.u32 2102212464, %v430
        %v443 = vshrl.u32 920167782, %v431
        %v444 = vor.u32 %v442, %v443
        %v445 = vshll.u32 920167782, %v430
        %v446 = vshrl.u32 1326507024, %v431
        %v447 = vor.u32 %v445, %v446
        %vm448 = vcmp.lt.s32.totalorder %v429, 1
        %vm449 = vcmp.lt.s32.totalorder %v429, 2
        %vm450 = vcmp.lt.s32.totalorder %v429, 3
        %vm451 = vcmp.lt.s32.totalorder %v429, 4
        %v452 = vsel %vm448, %v432, %v435
        %v453 = vsel %vm451, %v441, 2102212464
        %v454 = vsel %vm450, %v438, %v453
        %v455 = vsel %vm449, %v452, %v454
        %v456 = vsel %vm448, %v435, %v438
        %v457 = vsel %vm451, %v444, 920167782
        %v458 = vsel %vm450, %v441, %v457
        %v459 = vsel %vm449, %v456, %v458
        %v460 = vsel %vm448, %v438, %v441
        %v461 = vsel %vm451, %v447, 1326507024
        %v462 = vsel %vm450, %v444, %v461
        %v463 = vsel %vm449, %v460, %v462
        %v464 = vshll.u32 %v424, 8
        %v465 = vmul.u32.u64.compose %v464, %v463
        %v466 = vextract.low.u32 %v465
        %v467 = vextract.high.u32 %v465
        %v468 = vmul.u32.u64.compose %v464, %v459
        %v469 = vextract.low.u32 %v468
        %v470 = vextract.high.u32 %v468
        %v471 = vmul.u32 %v464, %v455
        %v472 = vadd.s32 %v467, %v469
        %vm473 = vc.u32 %v467, %v469
        %v474 = vadd.s32 %v470, 1
        %v475 = vsel %vm473, %v474, %v470
        %v476 = vadd.s32 %v471, %v475
        %v477 = vadd.s32 %v476, 536870912
        %v478 = vshrl.u32 %v477, 30
        %v479 = vshll.u32 %v478, 30
        %v480 = vsub.s32 %v476, %v479
        %vm481 = vcmp.lt.s32.totalorder %v480, 0
        %v482 = vsub.s32 0, %v480
        %v483 = vsel %vm481, %v482, %v480
        %v484 = vclz %v483
        %v485 = vsub.s32 %v484, 2
        %vm486 = vcmp.gt.s32.totalorder 0, %v485
        %v487 = vsel %vm486, 0, %v485
        %v488 = vsub.s32 32, %v487
        %v489 = vshll.u32 %v480, %v487
        %v490 = vshrl.u32 %v472, %v488
        %v491 = vor.u32 %v489, %v490
        %v492 = vsub.s32 4294967266, %v487
        %v493 = vadd.s32 %v492, 127
        %v494 = vshll.u32 %v493, 23
        %v495 = vor.u32 4788187, %v494
        %v496 = vand.u32 2147483647, %v495
        %v498 = vcvt.s32.f32 %v491
        %v499 = vmul.f32 %v498, %v496
        %v500 = vxor.u32 %v499, 2147483648
        %v501 = vsel %vm418, %v500, %v499
        %v502 = vsub.s32 4, %v478
        %v503 = vsel %vm418, %v502, %v478
        %v504 = vsel %vm417, %v309, %v501
        %v505 = vsel %vm417, 0, %v503
        %v506 = vcosq.f32.pop %v504
        %v507 = vsinq.f32.pop %v504
        %vm508 = vweird.f32 %v309
        %v509 = vadd.s32 %v505, 3
        %v510 = vand.u32 %v509, 3
        %vm511 = vcmp.lt.s32.totalorder %v510, 2
        %vm512 = vcmp.eq.s32.totalorder %v510, 0
        %v513 = vxor.u32 %v507, 2147483648
        %v514 = vsel %vm512, %v506, %v513
        %vm515 = vcmp.eq.s32.totalorder %v510, 2
        %v516 = vxor.u32 %v506, 2147483648
        %v517 = vsel %vm515, %v516, %v507
        %v518 = vsel %vm511, %v514, %v517
        %v519 = vsel %vm508, nan, %v518
        %520 = vst [vmem:[%s202] sm:$0xff] %v415
        %521 = vst [vmem:[%s202 + $0x8] sm:$0xff] %v519
        %s522 = sand.u32 %s117, 1
        %s523 = scalar_lea.sflag [#allocation3], %s522
        %s524 = sand.u32 %s117, 1
        %s525 = smul.addr %s524, 16
        %s526 = scalar_lea.vmem [#allocation2], %s525
        // Predicated region
        $region33: #{tpu_custom_call.1} parent=31 // pred_check
          %p527 = pneg %p127
        $region34: #{tpu_custom_call.1} parent=31 // pred_check_branch
          %529 = sbr.rel (%p527) target = $region36
        $region35: #{tpu_custom_call.1} parent=31 // pred_region
          %s530 = smul.u32 2, %s22
          %s532 = ssub.s32 256, 256
          %533 = vsyncadd %s523, %s532
          %s534 = sadd.s32 %s21, %s530
          %s535 = smul.addr %s534, 128
          %s536 = scalar_lea.hbm %s3, %s535
          %s537 = sshll.u32 %s526, 4
          %s538 = int_to_ptr.vmem [resolvable:$true] %s537
          %543 = dma.vmem_to_hbm [thread:$0]  %s538, 256, %s536, %s523, 128, 128, 8
        $region36: #{tpu_custom_call.1} parent=31 // pred_fallthru
          _
      $region32: #{tpu_custom_call.1} parent=5 // pred_fallthru
        _
      %p544 = scmp.le.s32.totalorder 2, %s12
      // Predicated region
      $region37: #{tpu_custom_call.1} parent=5 // pred_check
        %p545 = pneg %p544
      $region38: #{tpu_custom_call.1} parent=5 // pred_check_branch
        %547 = sbr.rel (%p545) target = $region40
      $region39: #{tpu_custom_call.1} parent=5 // pred_region
        %s548 = ssub.s32 %s12, 2
        // Predicated region
        $region41: #{tpu_custom_call.1} parent=39 // pred_check
          %p549 = pneg %p133
        $region42: #{tpu_custom_call.1} parent=39 // pred_check_branch
          %551 = sbr.rel (%p549) target = $region44
        $region43: #{tpu_custom_call.1} parent=39 // pred_region
          %s552 = sand.u32 %s118, 1
          %s553 = scalar_lea.sflag [#allocation3], %s552
          %s554 = sand.u32 %s118, 1
          %s555 = smul.addr %s554, 16
          %s556 = scalar_lea.vmem [#allocation2], %s555
          %557 = dma.done %s553, 256
        $region44: #{tpu_custom_call.1} parent=39 // pred_fallthru
          _
      $region40: #{tpu_custom_call.1} parent=5 // pred_fallthru
        _
    $region6: #{tpu_custom_call.1} parent=1 // loop_footer
      %s16 = sadd.s32 1, %s12
    $region7: #{tpu_custom_call.1} parent=1 // loop_footer_branch
      %11 = sbr.rel target = $region3
    $region8: #{tpu_custom_call.1} parent=1 // loop_exit
      _
    %558 = vsyncpa [#allocation3], 1
    %s559 = scalar_lea.sflag [#allocation3], 1
    %560 = vsyncpa %s559, 1

</llo_original>
